<compile_context>
chip_gen: v7x
topology: tpu7x:2x2x1
jax: 0.10.0
libtpu: 0.0.40
codegen_flags: <defaults>
</compile_context>

<pallas_src>
import functools

import jax
import jax.numpy as jnp
from jax.experimental import pallas as pl
from jax.experimental.pallas import tpu as pltpu

# ---- synthetic module dimensions -------------------------------------------
N, C_IN, H, W = 2, 4, 16, 16      # input x: [2, 4, 16, 16]  (NCHW)
HIDDEN = 32                       # base_net output channels
C_HEAD1 = 8                       # head 0 output channels
C_HEAD2 = 16                      # head 1 output channels
C_HEADS = C_HEAD1 + C_HEAD2       # fused head output channels

TILE_HW = 256                     # spatial tile (lanes); H*W = 256 -> grid=(1,)


def _shell_kernel(x_ref, wbt_ref, bbt_ref, wht_ref, bht_ref, o_ref):
    """One spatial tile of the Shell forward, transposed (channels, spatial) layout.

    x_ref   : (N, C_IN, T)       input, spatial positions on lanes
    wbt_ref : (HIDDEN, C_IN)     base 1x1-conv weight, transposed
    bbt_ref : (HIDDEN, 1)        base bias (column)
    wht_ref : (C_HEADS, HIDDEN)  fused head weights, transposed
    bht_ref : (C_HEADS, 1)       fused head biases (column)
    o_ref   : (N, C_HEADS, T)    fused head outputs for this tile
    """
    wbt = wbt_ref[...]
    bbt = bbt_ref[...]
    wht = wht_ref[...]
    bht = bht_ref[...]

    # Static unroll over the (small) batch: clean 2-D MXU matmuls, no in-kernel
    # transposes, lane-dense (T-wide) loads and stores.
    for b in range(x_ref.shape[0]):
        x2d = x_ref[b]                                        # (C_IN, T)
        feat = jnp.dot(wbt, x2d, preferred_element_type=jnp.float32)
        feat = jnp.maximum(feat + bbt, 0.0)                   # (HIDDEN, T)  (base_net + ReLU)
        out = jnp.dot(wht, feat, preferred_element_type=jnp.float32) + bht
        o_ref[b] = out.astype(o_ref.dtype)                    # (C_HEADS, T)


@functools.partial(jax.jit, static_argnums=())
def shell_forward(x_nchw, params):
    """Shell.forward: base_net then every head; returns list of NCHW outputs."""
    wb, bb, w1, b1, w2, b2 = params
    n, c, h, w = x_nchw.shape
    hw = h * w

    # Pre-pack weights once (tiny, fused into the jit): transpose + fuse heads.
    wbt = wb.T                                         # (HIDDEN, C_IN)
    bbt = bb.T                                         # (HIDDEN, 1)
    wht = jnp.concatenate([w1, w2], axis=1).T          # (C_HEADS, HIDDEN)
    bht = jnp.concatenate([b1, b2], axis=1).T          # (C_HEADS, 1)

    # NCHW -> (N, C, H*W): a free reshape, no transpose needed in this layout.
    x_t = x_nchw.reshape(n, c, hw)

    grid = (hw // TILE_HW,)        # = (1,) at this size: single step, no per-step overhead
    full = lambda j: (0, 0)        # weights/biases: constant full block
    tile3 = lambda j: (0, 0, j)    # spatial-tiled 3-D arrays

    out_t = pl.pallas_call(
        _shell_kernel,
        out_shape=jax.ShapeDtypeStruct((n, C_HEADS, hw), jnp.float32),
        grid_spec=pltpu.PrefetchScalarGridSpec(
            num_scalar_prefetch=0,
            grid=grid,
            in_specs=[
                pl.BlockSpec((n, c, TILE_HW), tile3),        # x (lane-dense)
                pl.BlockSpec((HIDDEN, c), full),             # base weight^T
                pl.BlockSpec((HIDDEN, 1), full),             # base bias column
                pl.BlockSpec((C_HEADS, HIDDEN), full),       # fused head weight^T
                pl.BlockSpec((C_HEADS, 1), full),            # fused head bias column
            ],
            out_specs=pl.BlockSpec((n, C_HEADS, TILE_HW), tile3),
        ),
        compiler_params=pltpu.CompilerParams(
            dimension_semantics=("parallel",)),
    )(x_t, wbt, bbt, wht, bht)

    # (N, C_HEADS, H*W) -> NCHW per head: a reshape + channel slice, both free.
    out_nchw = out_t.reshape(n, C_HEADS, h, w)
    return [out_nchw[:, :C_HEAD1], out_nchw[:, C_HEAD1:]]


def _reference_forward(x_nchw, params):
    """Plain-JAX reference matching the PyTorch semantics."""
    wb, bb, w1, b1, w2, b2 = params
    n, _, h, w = x_nchw.shape
    x_rows = jnp.transpose(x_nchw, (0, 2, 3, 1)).reshape(-1, C_IN)
    feat = jnp.maximum(x_rows @ wb + bb, 0.0)
    o1 = feat @ w1 + b1
    o2 = feat @ w2 + b2
    o1 = jnp.transpose(o1.reshape(n, h, w, C_HEAD1), (0, 3, 1, 2))
    o2 = jnp.transpose(o2.reshape(n, h, w, C_HEAD2), (0, 3, 1, 2))
    return [o1, o2]


def _init_params(key):
    ks = jax.random.split(key, 6)
    wb = jax.random.normal(ks[0], (C_IN, HIDDEN), jnp.float32) * 0.1
    bb = jax.random.normal(ks[1], (1, HIDDEN), jnp.float32) * 0.1
    w1 = jax.random.normal(ks[2], (HIDDEN, C_HEAD1), jnp.float32) * 0.1
    b1 = jax.random.normal(ks[3], (1, C_HEAD1), jnp.float32) * 0.1
    w2 = jax.random.normal(ks[4], (HIDDEN, C_HEAD2), jnp.float32) * 0.1
    b2 = jax.random.normal(ks[5], (1, C_HEAD2), jnp.float32) * 0.1
    return wb, bb, w1, b1, w2, b2


if __name__ == "__main__":
    key = jax.random.PRNGKey(0)
    k_x, k_p = jax.random.split(key)
    x = jax.random.normal(k_x, (N, C_IN, H, W), jnp.float32)
    params = _init_params(k_p)

    outs = shell_forward(x, params)
    outs = [jax.block_until_ready(o) for o in outs]

    refs = _reference_forward(x, params)
    for o, r in zip(outs, refs):
        assert o.shape == r.shape
        assert jnp.max(jnp.abs(o - r)) < 1e-4

    print("KERNEL_OK")
</pallas_src>

<mosaic_0001>
module attributes {stable_mosaic.version = 11 : i64} {
  func.func @_shell_kernel(%arg0: i32, %arg1: memref<2x4x256xf32, #tpu.memory_space<vmem>>, %arg2: memref<32x4xf32, #tpu.memory_space<vmem>>, %arg3: memref<32x1xf32, #tpu.memory_space<vmem>>, %arg4: memref<24x32xf32, #tpu.memory_space<vmem>>, %arg5: memref<24x1xf32, #tpu.memory_space<vmem>>, %arg6: memref<2x24x256xf32, #tpu.memory_space<vmem>>) attributes {dimension_semantics = [#tpu.dimension_semantics<parallel>], iteration_bounds = array<i64: 1>, scalar_prefetch = 0 : i64, scratch_operands = 0 : i64, tpu.core_type = #tpu.core_type<tc>, window_params = [{transform_indices = @transform_0, window_bounds = array<i64: 2, 4, 256>}, {pipeline_mode = #tpu.pipeline_mode<synchronous>, transform_indices = @transform_1, window_bounds = array<i64: 32, 4>}, {pipeline_mode = #tpu.pipeline_mode<synchronous>, transform_indices = @transform_2, window_bounds = array<i64: 32, 1>}, {pipeline_mode = #tpu.pipeline_mode<synchronous>, transform_indices = @transform_3, window_bounds = array<i64: 24, 32>}, {pipeline_mode = #tpu.pipeline_mode<synchronous>, transform_indices = @transform_4, window_bounds = array<i64: 24, 1>}, {transform_indices = @transform_5, window_bounds = array<i64: 2, 24, 256>}]} {
    %c0 = arith.constant 0 : index
    %c0_0 = arith.constant 0 : index
    %0 = vector.load %arg2[%c0, %c0_0] : memref<32x4xf32, #tpu.memory_space<vmem>>, vector<32x4xf32>
    %c0_1 = arith.constant 0 : index
    %c0_2 = arith.constant 0 : index
    %1 = vector.load %arg3[%c0_1, %c0_2] : memref<32x1xf32, #tpu.memory_space<vmem>>, vector<32x1xf32>
    %c0_3 = arith.constant 0 : index
    %c0_4 = arith.constant 0 : index
    %2 = vector.load %arg4[%c0_3, %c0_4] : memref<24x32xf32, #tpu.memory_space<vmem>>, vector<24x32xf32>
    %c0_5 = arith.constant 0 : index
    %c0_6 = arith.constant 0 : index
    %3 = vector.load %arg5[%c0_5, %c0_6] : memref<24x1xf32, #tpu.memory_space<vmem>>, vector<24x1xf32>
    %c0_7 = arith.constant 0 : index
    %c0_8 = arith.constant 0 : index
    %c0_9 = arith.constant 0 : index
    %4 = vector.load %arg1[%c0_7, %c0_8, %c0_9] : memref<2x4x256xf32, #tpu.memory_space<vmem>>, vector<1x4x256xf32>
    %5 = vector.shape_cast %4 : vector<1x4x256xf32> to vector<4x256xf32>
    %cst = arith.constant dense<0.000000e+00> : vector<32x256xf32>
    %6 = tpu.matmul %0, %5, %cst {dimension_numbers = #tpu.dot_dimension_numbers<[1], [0], [0], [1], [0, 0, 1, 1], [], []>} : vector<32x4xf32>, vector<4x256xf32>, vector<32x256xf32> -> vector<32x256xf32>
    %7 = vector.broadcast %1 : vector<32x1xf32> to vector<32x256xf32>
    %8 = arith.addf %6, %7 : vector<32x256xf32>
    %cst_10 = arith.constant 0.000000e+00 : f32
    %9 = vector.broadcast %cst_10 : f32 to vector<32x256xf32>
    %10 = arith.maximumf %8, %9 : vector<32x256xf32>
    %cst_11 = arith.constant dense<0.000000e+00> : vector<24x256xf32>
    %11 = tpu.matmul %2, %10, %cst_11 {dimension_numbers = #tpu.dot_dimension_numbers<[1], [0], [0], [1], [0, 0, 1, 1], [], []>} : vector<24x32xf32>, vector<32x256xf32>, vector<24x256xf32> -> vector<24x256xf32>
    %12 = vector.broadcast %3 : vector<24x1xf32> to vector<24x256xf32>
    %13 = arith.addf %11, %12 : vector<24x256xf32>
    %c0_12 = arith.constant 0 : index
    %c0_13 = arith.constant 0 : index
    %c0_14 = arith.constant 0 : index
    %14 = vector.load %arg6[%c0_12, %c0_13, %c0_14] : memref<2x24x256xf32, #tpu.memory_space<vmem>>, vector<1x24x256xf32>
    %15 = vector.shape_cast %14 : vector<1x24x256xf32> to vector<24x256xf32>
    %16 = vector.shape_cast %13 : vector<24x256xf32> to vector<1x24x256xf32>
    tpu.vector_store %arg6[%c0_12, %c0_13, %c0_14], %16 {strides = array<i32>} : memref<2x24x256xf32, #tpu.memory_space<vmem>>, vector<1x24x256xf32>,
    %c1 = arith.constant 1 : index
    %c0_15 = arith.constant 0 : index
    %c0_16 = arith.constant 0 : index
    %17 = vector.load %arg1[%c1, %c0_15, %c0_16] : memref<2x4x256xf32, #tpu.memory_space<vmem>>, vector<1x4x256xf32>
    %18 = vector.shape_cast %17 : vector<1x4x256xf32> to vector<4x256xf32>
    %cst_17 = arith.constant dense<0.000000e+00> : vector<32x256xf32>
    %19 = tpu.matmul %0, %18, %cst_17 {dimension_numbers = #tpu.dot_dimension_numbers<[1], [0], [0], [1], [0, 0, 1, 1], [], []>} : vector<32x4xf32>, vector<4x256xf32>, vector<32x256xf32> -> vector<32x256xf32>
    %20 = vector.broadcast %1 : vector<32x1xf32> to vector<32x256xf32>
    %21 = arith.addf %19, %20 : vector<32x256xf32>
    %cst_18 = arith.constant 0.000000e+00 : f32
    %22 = vector.broadcast %cst_18 : f32 to vector<32x256xf32>
    %23 = arith.maximumf %21, %22 : vector<32x256xf32>
    %cst_19 = arith.constant dense<0.000000e+00> : vector<24x256xf32>
    %24 = tpu.matmul %2, %23, %cst_19 {dimension_numbers = #tpu.dot_dimension_numbers<[1], [0], [0], [1], [0, 0, 1, 1], [], []>} : vector<24x32xf32>, vector<32x256xf32>, vector<24x256xf32> -> vector<24x256xf32>
    %25 = vector.broadcast %3 : vector<24x1xf32> to vector<24x256xf32>
    %26 = arith.addf %24, %25 : vector<24x256xf32>
    %c1_20 = arith.constant 1 : index
    %c0_21 = arith.constant 0 : index
    %c0_22 = arith.constant 0 : index
    %27 = vector.load %arg6[%c1_20, %c0_21, %c0_22] : memref<2x24x256xf32, #tpu.memory_space<vmem>>, vector<1x24x256xf32>
    %28 = vector.shape_cast %27 : vector<1x24x256xf32> to vector<24x256xf32>
    %29 = vector.shape_cast %26 : vector<24x256xf32> to vector<1x24x256xf32>
    tpu.vector_store %arg6[%c1_20, %c0_21, %c0_22], %29 {strides = array<i32>} : memref<2x24x256xf32, #tpu.memory_space<vmem>>, vector<1x24x256xf32>,
    return
  }
  func.func @transform_0(%arg0: i32) -> (i32, i32, i32) {
    %c0_i32 = arith.constant 0 : i32
    %c0_i32_0 = arith.constant 0 : i32
    %c0_i32_1 = arith.constant 0 : i32
    return %c0_i32, %c0_i32_0, %arg0 : i32, i32, i32
  }
  func.func @transform_1(%arg0: i32) -> (i32, i32) {
    %c0_i32 = arith.constant 0 : i32
    %c0_i32_0 = arith.constant 0 : i32
    %c0_i32_1 = arith.constant 0 : i32
    return %c0_i32, %c0_i32_0 : i32, i32
  }
  func.func @transform_2(%arg0: i32) -> (i32, i32) {
    %c0_i32 = arith.constant 0 : i32
    %c0_i32_0 = arith.constant 0 : i32
    %c0_i32_1 = arith.constant 0 : i32
    return %c0_i32, %c0_i32_0 : i32, i32
  }
  func.func @transform_3(%arg0: i32) -> (i32, i32) {
    %c0_i32 = arith.constant 0 : i32
    %c0_i32_0 = arith.constant 0 : i32
    %c0_i32_1 = arith.constant 0 : i32
    return %c0_i32, %c0_i32_0 : i32, i32
  }
  func.func @transform_4(%arg0: i32) -> (i32, i32) {
    %c0_i32 = arith.constant 0 : i32
    %c0_i32_0 = arith.constant 0 : i32
    %c0_i32_1 = arith.constant 0 : i32
    return %c0_i32, %c0_i32_0 : i32, i32
  }
  func.func @transform_5(%arg0: i32) -> (i32, i32, i32) {
    %c0_i32 = arith.constant 0 : i32
    %c0_i32_0 = arith.constant 0 : i32
    %c0_i32_1 = arith.constant 0 : i32
    return %c0_i32, %c0_i32_0, %arg0 : i32, i32, i32
  }
}

</mosaic_0001>

<llo_original>
// kernel: shell_forward.1
$region0: #{shell_forward.1}
  #allocation0 [shape = 'u32[]', space=smem, size = 0x4, offset = 0x4, fixed_abs, tag = 'smem constant byte address 0x4 - core index']
  #allocation1 [shape = 'u32[144,128]{1,0:T(1,128)}', space=vmem, size = 0x12000, scoped, tag = 'internal scratch']
  %s0 = inlined_call_operand.vmem [shape: f32[2,4,256], index: 0, kind: input, shape index: {}]
  %s1 = inlined_call_operand.vmem [shape: f32[32,4], index: 1, kind: input, shape index: {}]
  %s2 = inlined_call_operand.vmem [shape: f32[32,1], index: 2, kind: input, shape index: {}]
  %s3 = inlined_call_operand.vmem [shape: f32[24,32], index: 3, kind: input, shape index: {}]
  %s4 = inlined_call_operand.vmem [shape: f32[24,1], index: 4, kind: input, shape index: {}]
  %s5 = inlined_call_operand.vmem [shape: f32[2,24,256], index: 5, kind: output, shape index: {}]
  %s6 = sld [smem:[#allocation0]]
  $region30: #{shell_forward.1} parent=0
    _
  %s8 = ssub.s32 1, %s6
  %s9 = scalar_select 0, %s8, %s6
  // Predicated region
  $region2: #{shell_forward.1} parent=0 // pred_check
    _
  $region3: #{shell_forward.1} parent=0 // pred_check_branch
    %11 = sbr.rel (0) target = $region5
  $region4: #{shell_forward.1} parent=0 // pred_region
    _
  $region5: #{shell_forward.1} parent=0 // pred_fallthru
    _
  // Predicated region
  $region6: #{shell_forward.1} parent=0 // pred_check
    _
  $region7: #{shell_forward.1} parent=0 // pred_check_branch
    %13 = sbr.rel (0) target = $region9
  $region8: #{shell_forward.1} parent=0 // pred_region
    _
  $region9: #{shell_forward.1} parent=0 // pred_fallthru
    _
  // Predicated region
  $region10: #{shell_forward.1} parent=0 // pred_check
    _
  $region11: #{shell_forward.1} parent=0 // pred_check_branch
    %15 = sbr.rel (0) target = $region13
  $region12: #{shell_forward.1} parent=0 // pred_region
    _
  $region13: #{shell_forward.1} parent=0 // pred_fallthru
    _
  // Predicated region
  $region14: #{shell_forward.1} parent=0 // pred_check
    _
  $region15: #{shell_forward.1} parent=0 // pred_check_branch
    %17 = sbr.rel (0) target = $region17
  $region16: #{shell_forward.1} parent=0 // pred_region
    _
  $region17: #{shell_forward.1} parent=0 // pred_fallthru
    _
  // Predicated region
  $region18: #{shell_forward.1} parent=0 // pred_check
    _
  $region19: #{shell_forward.1} parent=0 // pred_check_branch
    %19 = sbr.rel (0) target = $region21
  $region20: #{shell_forward.1} parent=0 // pred_region
    _
  $region21: #{shell_forward.1} parent=0 // pred_fallthru
    _
  %v20 = vld [vmem:[%s1] sm:$0xff]
  %v21 = vld [vmem:[%s1 + $0x8] sm:$0xff]
  %v22 = vld [vmem:[%s1 + $0x10] sm:$0xff]
  %v23 = vld [vmem:[%s1 + $0x18] sm:$0xff]
  %v24 = vld [vmem:[%s2] sm:$0xff]
  %v25 = vld [vmem:[%s2 + $0x8] sm:$0xff]
  %v26 = vld [vmem:[%s2 + $0x10] sm:$0xff]
  %v27 = vld [vmem:[%s2 + $0x18] sm:$0xff]
  %v28 = vld [vmem:[%s3] sm:$0xff]
  %v29 = vld [vmem:[%s3 + $0x8] sm:$0xff]
  %v30 = vld [vmem:[%s3 + $0x10] sm:$0xff]
  %v31 = vld [vmem:[%s4] sm:$0xff]
  %v32 = vld [vmem:[%s4 + $0x8] sm:$0xff]
  %v33 = vld [vmem:[%s4 + $0x10] sm:$0xff]
  %v34 = vld [vmem:[%s0] sm:$0xff]
  %36 = vset.pattern.permute.xlu0 0
  %37 = vperm.xlu0 %36, %v24
  %v38 = vpop.permute.xlu0 %37
  %41 = vset.pattern.permute.xlu0 0
  %42 = vperm.xlu0 %41, %v25
  %v43 = vpop.permute.xlu0 %42
  %46 = vset.pattern.permute.xlu0 0
  %47 = vperm.xlu0 %46, %v26
  %v48 = vpop.permute.xlu0 %47
  %51 = vset.pattern.permute.xlu0 0
  %52 = vperm.xlu0 %51, %v27
  %v53 = vpop.permute.xlu0 %52
  %v56 = vcombine.high %v34, %v34
  %vm57 = vcmask 31744
  %v59 = vsel %vm57, %v20, 0
  %v62 = vsel %vm57, %v21, 0
  %v65 = vsel %vm57, %v22, 0
  %v68 = vsel %vm57, %v23, 0
  %vm70 = vcmask 1043456
  %v71 = vsel %vm70, %v34, 0
  %v73 = vsel %vm70, %v56, 0
  %75 = vmatprep.subr.mxu0 %v73
  %76 = vmatpush1.msra.mxu0 %v71
  %77 = vmatprep.subr.mxu0 0.0
  %78 = vmatpush1.msra.mxu0 0.0
  %79 = vmatprep.subr.mxu0 0.0
  %80 = vmatpush1.msra.mxu0 0.0
  %81 = vmatprep.subr.mxu0 0.0
  %82 = vmatpush1.msra.mxu0 0.0
  %83 = vmatprep.subr.mxu0 0.0
  %84 = vmatpush1.msra.mxu0 0.0
  %85 = vmatprep.subr.mxu0 0.0
  %86 = vmatpush1.msra.mxu0 0.0
  %87 = vmatprep.subr.mxu0 0.0
  %88 = vmatpush1.msra.mxu0 0.0
  %89 = vmatprep.subr.mxu0 0.0
  %90 = vmatpush1.msra.mxu0 0.0
  %91 = vmatprep.subr.mxu0 0.0
  %92 = vmatpush1.msra.mxu0 0.0
  %93 = vmatprep.subr.mxu0 0.0
  %94 = vmatpush1.msra.mxu0 0.0
  %95 = vmatprep.subr.mxu0 0.0
  %96 = vmatpush1.msra.mxu0 0.0
  %97 = vmatprep.subr.mxu0 0.0
  %98 = vmatpush1.msra.mxu0 0.0
  %99 = vmatprep.subr.mxu0 0.0
  %100 = vmatpush1.msra.mxu0 0.0
  %101 = vmatprep.subr.mxu0 0.0
  %102 = vmatpush1.msra.mxu0 0.0
  %103 = vmatprep.subr.mxu0 0.0
  %104 = vmatpush1.msra.mxu0 0.0
  %105 = vmatprep.subr.mxu0 0.0
  %106 = vmatpush1.msra.mxu0 0.0
  %107 = vmatprep.subr.mxu0 0.0
  %108 = vmatpush1.msra.mxu0 0.0
  %109 = vmatprep.subr.mxu0 0.0
  %110 = vmatpush1.msra.mxu0 0.0
  %111 = vmatprep.subr.mxu0 0.0
  %112 = vmatpush1.msra.mxu0 0.0
  %113 = vmatprep.subr.mxu0 0.0
  %114 = vmatpush1.msra.mxu0 0.0
  %115 = vmatprep.subr.mxu0 0.0
  %116 = vmatpush1.msra.mxu0 0.0
  %117 = vmatprep.subr.mxu0 0.0
  %118 = vmatpush1.msra.mxu0 0.0
  %119 = vmatprep.subr.mxu0 0.0
  %120 = vmatpush1.msra.mxu0 0.0
  %121 = vmatprep.subr.mxu0 0.0
  %122 = vmatpush1.msra.mxu0 0.0
  %123 = vmatprep.subr.mxu0 0.0
  %124 = vmatpush1.msra.mxu0 0.0
  %125 = vmatprep.subr.mxu0 0.0
  %126 = vmatpush1.msra.mxu0 0.0
  %127 = vmatprep.subr.mxu0 0.0
  %128 = vmatpush1.msra.mxu0 0.0
  %129 = vmatprep.subr.mxu0 0.0
  %130 = vmatpush1.msra.mxu0 0.0
  %131 = vmatprep.subr.mxu0 0.0
  %132 = vmatpush1.msra.mxu0 0.0
  %133 = vmatprep.subr.mxu0 0.0
  %134 = vmatpush1.msra.mxu0 0.0
  %135 = vmatprep.subr.mxu0 0.0
  %136 = vmatpush1.msra.mxu0 0.0
  %137 = vmatprep.subr.mxu0 0.0
  %138 = vmatpush1.msra.mxu0 0.0
  %139 = vmatprep.mubr.f32.mxu0 0.0
  %140 = vmatmul.mubr.f32.gmra.mrb[0].mxu0 %v59
  %v141 = vpop.f32.mrb[0].mxu0
  %v142 = vadd.f32 %v38, %v141
  %v143 = vpop.f32.mrb[0].mxu0
  %v144 = vadd.f32 %v38, %v143
  %145 = vmatprep.mubr.f32.mxu0 0.0
  %146 = vmatmul.mubr.f32.gmra.mrb[0].mxu0 %v62
  %v147 = vpop.f32.mrb[0].mxu0
  %v148 = vadd.f32 %v43, %v147
  %v149 = vpop.f32.mrb[0].mxu0
  %v150 = vadd.f32 %v43, %v149
  %151 = vmatprep.mubr.f32.mxu0 0.0
  %152 = vmatmul.mubr.f32.gmra.mrb[0].mxu0 %v65
  %v153 = vpop.f32.mrb[0].mxu0
  %v154 = vadd.f32 %v48, %v153
  %v155 = vpop.f32.mrb[0].mxu0
  %v156 = vadd.f32 %v48, %v155
  %157 = vmatprep.mubr.f32.mxu0 0.0
  %158 = vmatmul.mubr.f32.gmra.mrb[0].mxu0 %v68
  %v159 = vpop.f32.mrb[0].mxu0
  %v160 = vadd.f32 %v53, %v159
  %v161 = vpop.f32.mrb[0].mxu0
  %v162 = vadd.f32 %v53, %v161
  %163 = vdwg.mxu0
  %v164 = vmax.f32 %v142, 0.0
  %v165 = vmax.f32 %v144, 0.0
  %v166 = vmax.f32 %v148, 0.0
  %v167 = vmax.f32 %v150, 0.0
  %v168 = vmax.f32 %v154, 0.0
  %v169 = vmax.f32 %v156, 0.0
  %v170 = vmax.f32 %v160, 0.0
  %v171 = vmax.f32 %v162, 0.0
  %173 = vset.pattern.permute.xlu0 0
  %174 = vperm.xlu0 %173, %v31
  %v175 = vpop.permute.xlu0 %174
  %178 = vset.pattern.permute.xlu0 0
  %179 = vperm.xlu0 %178, %v32
  %v180 = vpop.permute.xlu0 %179
  %183 = vset.pattern.permute.xlu0 0
  %184 = vperm.xlu0 %183, %v33
  %v185 = vpop.permute.xlu0 %184
  %vm187 = vcmask 261120
  %v189 = vsel %vm187, %v28, 0
  %v192 = vsel %vm187, %v29, 0
  %v195 = vsel %vm187, %v30, 0
  %197 = vmatprep.subr.mxu0 %v165
  %198 = vmatpush1.msra.mxu0 %v164
  %199 = vmatprep.subr.mxu0 %v167
  %200 = vmatpush1.msra.mxu0 %v166
  %201 = vmatprep.subr.mxu0 %v169
  %202 = vmatpush1.msra.mxu0 %v168
  %203 = vmatprep.subr.mxu0 %v171
  %204 = vmatpush1.msra.mxu0 %v170
  %205 = vmatprep.subr.mxu0 0.0
  %206 = vmatpush1.msra.mxu0 0.0
  %207 = vmatprep.subr.mxu0 0.0
  %208 = vmatpush1.msra.mxu0 0.0
  %209 = vmatprep.subr.mxu0 0.0
  %210 = vmatpush1.msra.mxu0 0.0
  %211 = vmatprep.subr.mxu0 0.0
  %212 = vmatpush1.msra.mxu0 0.0
  %213 = vmatprep.subr.mxu0 0.0
  %214 = vmatpush1.msra.mxu0 0.0
  %215 = vmatprep.subr.mxu0 0.0
  %216 = vmatpush1.msra.mxu0 0.0
  %217 = vmatprep.subr.mxu0 0.0
  %218 = vmatpush1.msra.mxu0 0.0
  %219 = vmatprep.subr.mxu0 0.0
  %220 = vmatpush1.msra.mxu0 0.0
  %221 = vmatprep.subr.mxu0 0.0
  %222 = vmatpush1.msra.mxu0 0.0
  %223 = vmatprep.subr.mxu0 0.0
  %224 = vmatpush1.msra.mxu0 0.0
  %225 = vmatprep.subr.mxu0 0.0
  %226 = vmatpush1.msra.mxu0 0.0
  %227 = vmatprep.subr.mxu0 0.0
  %228 = vmatpush1.msra.mxu0 0.0
  %229 = vmatprep.subr.mxu0 0.0
  %230 = vmatpush1.msra.mxu0 0.0
  %231 = vmatprep.subr.mxu0 0.0
  %232 = vmatpush1.msra.mxu0 0.0
  %233 = vmatprep.subr.mxu0 0.0
  %234 = vmatpush1.msra.mxu0 0.0
  %235 = vmatprep.subr.mxu0 0.0
  %236 = vmatpush1.msra.mxu0 0.0
  %237 = vmatprep.subr.mxu0 0.0
  %238 = vmatpush1.msra.mxu0 0.0
  %239 = vmatprep.subr.mxu0 0.0
  %240 = vmatpush1.msra.mxu0 0.0
  %241 = vmatprep.subr.mxu0 0.0
  %242 = vmatpush1.msra.mxu0 0.0
  %243 = vmatprep.subr.mxu0 0.0
  %244 = vmatpush1.msra.mxu0 0.0
  %245 = vmatprep.subr.mxu0 0.0
  %246 = vmatpush1.msra.mxu0 0.0
  %247 = vmatprep.subr.mxu0 0.0
  %248 = vmatpush1.msra.mxu0 0.0
  %249 = vmatprep.subr.mxu0 0.0
  %250 = vmatpush1.msra.mxu0 0.0
  %251 = vmatprep.subr.mxu0 0.0
  %252 = vmatpush1.msra.mxu0 0.0
  %253 = vmatprep.subr.mxu0 0.0
  %254 = vmatpush1.msra.mxu0 0.0
  %255 = vmatprep.subr.mxu0 0.0
  %256 = vmatpush1.msra.mxu0 0.0
  %257 = vmatprep.subr.mxu0 0.0
  %258 = vmatpush1.msra.mxu0 0.0
  %259 = vmatprep.subr.mxu0 0.0
  %260 = vmatpush1.msra.mxu0 0.0
  %261 = vmatprep.mubr.f32.mxu0 0.0
  %262 = vmatmul.mubr.f32.gmra.mrb[0].mxu0 %v189
  %v263 = vpop.f32.mrb[0].mxu0
  %v264 = vadd.f32 %v175, %v263
  %v265 = vpop.f32.mrb[0].mxu0
  %v266 = vadd.f32 %v175, %v265
  %267 = vmatprep.mubr.f32.mxu0 0.0
  %268 = vmatmul.mubr.f32.gmra.mrb[0].mxu0 %v192
  %v269 = vpop.f32.mrb[0].mxu0
  %v270 = vadd.f32 %v180, %v269
  %v271 = vpop.f32.mrb[0].mxu0
  %v272 = vadd.f32 %v180, %v271
  %273 = vmatprep.mubr.f32.mxu0 0.0
  %274 = vmatmul.mubr.f32.gmra.mrb[0].mxu0 %v195
  %v275 = vpop.f32.mrb[0].mxu0
  %v276 = vadd.f32 %v185, %v275
  %v277 = vpop.f32.mrb[0].mxu0
  %v278 = vadd.f32 %v185, %v277
  %279 = vdwg.mxu0
  %280 = vst [vmem:[%s5] sm:$0xff] %v264
  %281 = vst [vmem:[%s5 + $0x8] sm:$0xff] %v266
  %282 = vst [vmem:[%s5 + $0x10] sm:$0xff] %v270
  %283 = vst [vmem:[%s5 + $0x18] sm:$0xff] %v272
  %284 = vst [vmem:[%s5 + $0x20] sm:$0xff] %v276
  %285 = vst [vmem:[%s5 + $0x28] sm:$0xff] %v278
  %s286 = scalar_lea.vmem %s0, 8
  %v287 = vld [vmem:[%s286] sm:$0xff]
  %v289 = vcombine.high %v287, %v287
  %v290 = vsel %vm70, %v287, 0
  %v292 = vsel %vm70, %v289, 0
  %294 = vmatprep.subr.mxu0 %v292
  %295 = vmatpush1.msra.mxu0 %v290
  %296 = vmatprep.subr.mxu0 0.0
  %297 = vmatpush1.msra.mxu0 0.0
  %298 = vmatprep.subr.mxu0 0.0
  %299 = vmatpush1.msra.mxu0 0.0
  %300 = vmatprep.subr.mxu0 0.0
  %301 = vmatpush1.msra.mxu0 0.0
  %302 = vmatprep.subr.mxu0 0.0
  %303 = vmatpush1.msra.mxu0 0.0
  %304 = vmatprep.subr.mxu0 0.0
  %305 = vmatpush1.msra.mxu0 0.0
  %306 = vmatprep.subr.mxu0 0.0
  %307 = vmatpush1.msra.mxu0 0.0
  %308 = vmatprep.subr.mxu0 0.0
  %309 = vmatpush1.msra.mxu0 0.0
  %310 = vmatprep.subr.mxu0 0.0
  %311 = vmatpush1.msra.mxu0 0.0
  %312 = vmatprep.subr.mxu0 0.0
  %313 = vmatpush1.msra.mxu0 0.0
  %314 = vmatprep.subr.mxu0 0.0
  %315 = vmatpush1.msra.mxu0 0.0
  %316 = vmatprep.subr.mxu0 0.0
  %317 = vmatpush1.msra.mxu0 0.0
  %318 = vmatprep.subr.mxu0 0.0
  %319 = vmatpush1.msra.mxu0 0.0
  %320 = vmatprep.subr.mxu0 0.0
  %321 = vmatpush1.msra.mxu0 0.0
  %322 = vmatprep.subr.mxu0 0.0
  %323 = vmatpush1.msra.mxu0 0.0
  %324 = vmatprep.subr.mxu0 0.0
  %325 = vmatpush1.msra.mxu0 0.0
  %326 = vmatprep.subr.mxu0 0.0
  %327 = vmatpush1.msra.mxu0 0.0
  %328 = vmatprep.subr.mxu0 0.0
  %329 = vmatpush1.msra.mxu0 0.0
  %330 = vmatprep.subr.mxu0 0.0
  %331 = vmatpush1.msra.mxu0 0.0
  %332 = vmatprep.subr.mxu0 0.0
  %333 = vmatpush1.msra.mxu0 0.0
  %334 = vmatprep.subr.mxu0 0.0
  %335 = vmatpush1.msra.mxu0 0.0
  %336 = vmatprep.subr.mxu0 0.0
  %337 = vmatpush1.msra.mxu0 0.0
  %338 = vmatprep.subr.mxu0 0.0
  %339 = vmatpush1.msra.mxu0 0.0
  %340 = vmatprep.subr.mxu0 0.0
  %341 = vmatpush1.msra.mxu0 0.0
  %342 = vmatprep.subr.mxu0 0.0
  %343 = vmatpush1.msra.mxu0 0.0
  %344 = vmatprep.subr.mxu0 0.0
  %345 = vmatpush1.msra.mxu0 0.0
  %346 = vmatprep.subr.mxu0 0.0
  %347 = vmatpush1.msra.mxu0 0.0
  %348 = vmatprep.subr.mxu0 0.0
  %349 = vmatpush1.msra.mxu0 0.0
  %350 = vmatprep.subr.mxu0 0.0
  %351 = vmatpush1.msra.mxu0 0.0
  %352 = vmatprep.subr.mxu0 0.0
  %353 = vmatpush1.msra.mxu0 0.0
  %354 = vmatprep.subr.mxu0 0.0
  %355 = vmatpush1.msra.mxu0 0.0
  %356 = vmatprep.subr.mxu0 0.0
  %357 = vmatpush1.msra.mxu0 0.0
  %358 = vmatprep.mubr.f32.mxu0 0.0
  %359 = vmatmul.mubr.f32.gmra.mrb[0].mxu0 %v59
  %v360 = vpop.f32.mrb[0].mxu0
  %v361 = vadd.f32 %v38, %v360
  %v362 = vpop.f32.mrb[0].mxu0
  %v363 = vadd.f32 %v38, %v362
  %364 = vmatprep.mubr.f32.mxu0 0.0
  %365 = vmatmul.mubr.f32.gmra.mrb[0].mxu0 %v62
  %v366 = vpop.f32.mrb[0].mxu0
  %v367 = vadd.f32 %v43, %v366
  %v368 = vpop.f32.mrb[0].mxu0
  %v369 = vadd.f32 %v43, %v368
  %370 = vmatprep.mubr.f32.mxu0 0.0
  %371 = vmatmul.mubr.f32.gmra.mrb[0].mxu0 %v65
  %v372 = vpop.f32.mrb[0].mxu0
  %v373 = vadd.f32 %v48, %v372
  %v374 = vpop.f32.mrb[0].mxu0
  %v375 = vadd.f32 %v48, %v374
  %376 = vmatprep.mubr.f32.mxu0 0.0
  %377 = vmatmul.mubr.f32.gmra.mrb[0].mxu0 %v68
  %v378 = vpop.f32.mrb[0].mxu0
  %v379 = vadd.f32 %v53, %v378
  %v380 = vpop.f32.mrb[0].mxu0
  %v381 = vadd.f32 %v53, %v380
  %382 = vdwg.mxu0
  %v383 = vmax.f32 %v361, 0.0
  %v384 = vmax.f32 %v363, 0.0
  %v385 = vmax.f32 %v367, 0.0
  %v386 = vmax.f32 %v369, 0.0
  %v387 = vmax.f32 %v373, 0.0
  %v388 = vmax.f32 %v375, 0.0
  %v389 = vmax.f32 %v379, 0.0
  %v390 = vmax.f32 %v381, 0.0
  %391 = vmatprep.subr.mxu0 %v384
  %392 = vmatpush1.msra.mxu0 %v383
  %393 = vmatprep.subr.mxu0 %v386
  %394 = vmatpush1.msra.mxu0 %v385
  %395 = vmatprep.subr.mxu0 %v388
  %396 = vmatpush1.msra.mxu0 %v387
  %397 = vmatprep.subr.mxu0 %v390
  %398 = vmatpush1.msra.mxu0 %v389
  %399 = vmatprep.subr.mxu0 0.0
  %400 = vmatpush1.msra.mxu0 0.0
  %401 = vmatprep.subr.mxu0 0.0
  %402 = vmatpush1.msra.mxu0 0.0
  %403 = vmatprep.subr.mxu0 0.0
  %404 = vmatpush1.msra.mxu0 0.0
  %405 = vmatprep.subr.mxu0 0.0
  %406 = vmatpush1.msra.mxu0 0.0
  %407 = vmatprep.subr.mxu0 0.0
  %408 = vmatpush1.msra.mxu0 0.0
  %409 = vmatprep.subr.mxu0 0.0
  %410 = vmatpush1.msra.mxu0 0.0
  %411 = vmatprep.subr.mxu0 0.0
  %412 = vmatpush1.msra.mxu0 0.0
  %413 = vmatprep.subr.mxu0 0.0
  %414 = vmatpush1.msra.mxu0 0.0
  %415 = vmatprep.subr.mxu0 0.0
  %416 = vmatpush1.msra.mxu0 0.0
  %417 = vmatprep.subr.mxu0 0.0
  %418 = vmatpush1.msra.mxu0 0.0
  %419 = vmatprep.subr.mxu0 0.0
  %420 = vmatpush1.msra.mxu0 0.0
  %421 = vmatprep.subr.mxu0 0.0
  %422 = vmatpush1.msra.mxu0 0.0
  %423 = vmatprep.subr.mxu0 0.0
  %424 = vmatpush1.msra.mxu0 0.0
  %425 = vmatprep.subr.mxu0 0.0
  %426 = vmatpush1.msra.mxu0 0.0
  %427 = vmatprep.subr.mxu0 0.0
  %428 = vmatpush1.msra.mxu0 0.0
  %429 = vmatprep.subr.mxu0 0.0
  %430 = vmatpush1.msra.mxu0 0.0
  %431 = vmatprep.subr.mxu0 0.0
  %432 = vmatpush1.msra.mxu0 0.0
  %433 = vmatprep.subr.mxu0 0.0
  %434 = vmatpush1.msra.mxu0 0.0
  %435 = vmatprep.subr.mxu0 0.0
  %436 = vmatpush1.msra.mxu0 0.0
  %437 = vmatprep.subr.mxu0 0.0
  %438 = vmatpush1.msra.mxu0 0.0
  %439 = vmatprep.subr.mxu0 0.0
  %440 = vmatpush1.msra.mxu0 0.0
  %441 = vmatprep.subr.mxu0 0.0
  %442 = vmatpush1.msra.mxu0 0.0
  %443 = vmatprep.subr.mxu0 0.0
  %444 = vmatpush1.msra.mxu0 0.0
  %445 = vmatprep.subr.mxu0 0.0
  %446 = vmatpush1.msra.mxu0 0.0
  %447 = vmatprep.subr.mxu0 0.0
  %448 = vmatpush1.msra.mxu0 0.0
  %449 = vmatprep.subr.mxu0 0.0
  %450 = vmatpush1.msra.mxu0 0.0
  %451 = vmatprep.subr.mxu0 0.0
  %452 = vmatpush1.msra.mxu0 0.0
  %453 = vmatprep.subr.mxu0 0.0
  %454 = vmatpush1.msra.mxu0 0.0
  %455 = vmatprep.mubr.f32.mxu0 0.0
  %456 = vmatmul.mubr.f32.gmra.mrb[0].mxu0 %v189
  %v457 = vpop.f32.mrb[0].mxu0
  %v458 = vadd.f32 %v175, %v457
  %v459 = vpop.f32.mrb[0].mxu0
  %v460 = vadd.f32 %v175, %v459
  %461 = vmatprep.mubr.f32.mxu0 0.0
  %462 = vmatmul.mubr.f32.gmra.mrb[0].mxu0 %v192
  %v463 = vpop.f32.mrb[0].mxu0
  %v464 = vadd.f32 %v180, %v463
  %v465 = vpop.f32.mrb[0].mxu0
  %v466 = vadd.f32 %v180, %v465
  %467 = vmatprep.mubr.f32.mxu0 0.0
  %468 = vmatmul.mubr.f32.gmra.mrb[0].mxu0 %v195
  %v469 = vpop.f32.mrb[0].mxu0
  %v470 = vadd.f32 %v185, %v469
  %v471 = vpop.f32.mrb[0].mxu0
  %v472 = vadd.f32 %v185, %v471
  %473 = vdwg.mxu0
  %s474 = scalar_lea.vmem %s5, 48
  %475 = vst [vmem:[%s474] sm:$0xff] %v458
  %476 = vst [vmem:[%s474 + $0x8] sm:$0xff] %v460
  %477 = vst [vmem:[%s474 + $0x10] sm:$0xff] %v464
  %478 = vst [vmem:[%s474 + $0x18] sm:$0xff] %v466
  %479 = vst [vmem:[%s474 + $0x20] sm:$0xff] %v470
  %480 = vst [vmem:[%s474 + $0x28] sm:$0xff] %v472
  // Predicated region
  $region22: #{shell_forward.1} parent=0 // pred_check
    _
  $region23: #{shell_forward.1} parent=0 // pred_check_branch
    %482 = sbr.rel (0) target = $region25
  $region24: #{shell_forward.1} parent=0 // pred_region
    _
  $region25: #{shell_forward.1} parent=0 // pred_fallthru
    _
  // Predicated region
  $region26: #{shell_forward.1} parent=0 // pred_check
    _
  $region27: #{shell_forward.1} parent=0 // pred_check_branch
    %484 = sbr.rel (0) target = $region29
  $region28: #{shell_forward.1} parent=0 // pred_region
    _
  $region29: #{shell_forward.1} parent=0 // pred_fallthru
    _

</llo_original>
